<compile_context>
chip_gen: v6e
topology: v6e:2x2x1
jax: 0.10.0
libtpu: 0.0.40
codegen_flags: <defaults>
</compile_context>

<pallas_src>
import time

import jax
import jax.numpy as jnp
from jax.experimental import pallas as pl
from jax.experimental.pallas import tpu as pltpu


# ----------------------------------------------------------------------------
# Host-side timer registry, mirroring get_timers()/Timer semantics.
# ----------------------------------------------------------------------------
class _Timer:
    def __init__(self, name):
        self.name = name
        self.elapsed = 0.0
        self._start = None
        self.input_shape = None
        self.output_shape = None

    def start(self):
        self._start = time.perf_counter()

    def stop(self):
        if self._start is not None:
            self.elapsed += time.perf_counter() - self._start
            self._start = None


class _Timers:
    def __init__(self):
        self._timers = {}

    def __call__(self, name):
        if name not in self._timers:
            self._timers[name] = _Timer(name)
        return self._timers[name]


_GLOBAL_TIMERS = _Timers()


def get_timers():
    assert _GLOBAL_TIMERS is not None
    return _GLOBAL_TIMERS


# ----------------------------------------------------------------------------
# TimerOP equivalent: identity on data + host timer side-effect.
# TODO(synk): autograd backward-pass timing (TimerOP.backward) has no clean
# Pallas equivalent here; only the forward semantics are reproduced.
# ----------------------------------------------------------------------------
def timer_op(x, timer_name, is_front):
    timers = get_timers()
    if is_front:
        timers(timer_name + "_fwd").start()
    else:
        timers(timer_name + "_fwd").stop()
    return x  # exact identity on the tensor data


# ----------------------------------------------------------------------------
# Pallas kernel for the wrapped model's hot path: out = x @ W + b
# Tiled over (M//tm, N//tn, K//tk) with an f32 VMEM accumulator carried over
# the K (reduction) axis; bias added at finalize.
# ----------------------------------------------------------------------------
def _linear_kernel(x_ref, w_ref, b_ref, o_ref, acc_ref):
    k = pl.program_id(2)

    @pl.when(k == 0)
    def _():
        acc_ref[...] = jnp.zeros_like(acc_ref)

    acc_ref[...] += jnp.dot(
        x_ref[...], w_ref[...], preferred_element_type=jnp.float32
    )

    @pl.when(k == pl.num_programs(2) - 1)
    def _():
        o_ref[...] = (acc_ref[...] + b_ref[...].astype(jnp.float32)).astype(
            o_ref.dtype
        )


def linear_pallas(x, w, b2, *, tm=16, tn=128, tk=128):
    """x: (M, K) bf16, w: (K, N) bf16, b2: (1, N) f32 -> (M, N) f32."""
    M, K = x.shape
    Kw, N = w.shape
    assert Kw == K and b2.shape == (1, N)
    assert K % tk == 0 and N % tn == 0, "lane-dense dims expected (multiples of 128)"

    # Pad M up to the sublane tile if needed (bf16 -> 16 rows per packed vreg).
    Mp = ((M + tm - 1) // tm) * tm
    if Mp != M:
        x = jnp.pad(x, ((0, Mp - M), (0, 0)))

    grid = (Mp // tm, N // tn, K // tk)

    bytes_accessed = (
        Mp * K * x.dtype.itemsize
        + K * N * w.dtype.itemsize
        + N * b2.dtype.itemsize
        + Mp * N * 4
    )
    cost = pl.CostEstimate(
        flops=2 * Mp * N * K, transcendentals=0, bytes_accessed=bytes_accessed
    )

    out = pl.pallas_call(
        _linear_kernel,
        out_shape=jax.ShapeDtypeStruct((Mp, N), jnp.float32),
        grid_spec=pltpu.PrefetchScalarGridSpec(
            num_scalar_prefetch=0,
            grid=grid,
            in_specs=[
                pl.BlockSpec((tm, tk), lambda i, j, k: (i, k)),
                pl.BlockSpec((tk, tn), lambda i, j, k: (k, j)),
                pl.BlockSpec((1, tn), lambda i, j, k: (0, j)),
            ],
            out_specs=pl.BlockSpec((tm, tn), lambda i, j, k: (i, j)),
            scratch_shapes=[pltpu.VMEM((tm, tn), jnp.float32)],
        ),
        compiler_params=pltpu.CompilerParams(
            dimension_semantics=("parallel", "parallel", "arbitrary"),
            vmem_limit_bytes=32 * 1024 * 1024,
        ),
        cost_estimate=cost,
    )(x, w, b2)

    return out[:M] if Mp != M else out


# ----------------------------------------------------------------------------
# TimerModule equivalent.
# ----------------------------------------------------------------------------
class TimerModule:
    def __init__(self, model, timer_name, report_shape=False):
        self.model = model
        self.timer_name = timer_name
        self.report_shape = report_shape

    def __call__(self, x):
        x = timer_op(x, self.timer_name, True)
        out = self.model(x)
        # Synchronize before stopping the clock so the timer measures device
        # execution rather than asynchronous dispatch (data is unchanged).
        out = jax.block_until_ready(out)
        out = timer_op(out, self.timer_name, False)
        if self.report_shape:
            timers = get_timers()
            timers(self.timer_name + "_shape").input_shape = tuple(x.shape)
            timers(self.timer_name + "_shape").output_shape = tuple(out.shape)
        return out


class LinearModel:
    """Linear layer; weights pre-cast to bf16, bias pre-shaped to (1, N)."""

    def __init__(self, d_in, d_out, key):
        k_w, k_b = jax.random.split(key)
        self.w = (jax.random.normal(k_w, (d_in, d_out), jnp.float32) * 0.02).astype(
            jnp.bfloat16
        )
        self.b = (jax.random.normal(k_b, (1, d_out), jnp.float32) * 0.02).astype(
            jnp.float32
        )

    def __call__(self, x):
        return linear_pallas(x.astype(jnp.bfloat16), self.w, self.b)


if __name__ == "__main__":
    key = jax.random.PRNGKey(0)
    k_x, k_m = jax.random.split(key)

    # Lane/sublane-friendly small shapes: batch multiple of 16 (bf16 sublane
    # tile), hidden dims multiples of 128 (lane-dense) -> grid (2, 2, 2).
    batch, d_in, d_out = 32, 256, 256
    x = jax.random.normal(k_x, (batch, d_in), jnp.float32)

    model = LinearModel(d_in, d_out, k_m)
    timed = TimerModule(model, "mlp", report_shape=True)

    out = timed(x)
    out = jax.block_until_ready(out)

    # Correctness check against plain JAX reference (TimerOP is identity).
    x_bf = x.astype(jnp.bfloat16)
    ref = (
        jnp.dot(
            x_bf.astype(jnp.float32),
            model.w.astype(jnp.float32),
            precision=jax.lax.Precision.HIGHEST,
        )
        + model.b
    )
    assert out.shape == (batch, d_out)
    assert jnp.allclose(out, ref, atol=2e-3, rtol=2e-3), "mismatch vs reference"

    # Timer registry was exercised (host-side side effect of TimerOP).
    assert get_timers()("mlp_fwd").elapsed >= 0.0
    assert get_timers()("mlp_shape").output_shape == (batch, d_out)

    print("KERNEL_OK")
</pallas_src>

<mosaic_0001>
module attributes {stable_mosaic.version = 11 : i64} {
  func.func @_linear_kernel(%arg0: i32, %arg1: i32, %arg2: i32, %arg3: memref<16x128xbf16, #tpu.memory_space<vmem>>, %arg4: memref<128x128xbf16, #tpu.memory_space<vmem>>, %arg5: memref<1x128xf32, #tpu.memory_space<vmem>>, %arg6: memref<16x128xf32, #tpu.memory_space<vmem>>, %arg7: memref<16x128xf32, #tpu.memory_space<vmem>>) attributes {dimension_semantics = [#tpu.dimension_semantics<parallel>, #tpu.dimension_semantics<parallel>, #tpu.dimension_semantics<arbitrary>], iteration_bounds = array<i64: 2, 2, 2>, scalar_prefetch = 0 : i64, scratch_operands = 1 : i64, tpu.core_type = #tpu.core_type<tc>, window_params = [{transform_indices = @transform_0, window_bounds = array<i64: 16, 128>}, {transform_indices = @transform_1, window_bounds = array<i64: 128, 128>}, {transform_indices = @transform_2, window_bounds = array<i64: 1, 128>}, {transform_indices = @transform_3, window_bounds = array<i64: 16, 128>}]} {
    %c0_i32 = arith.constant 0 : i32
    %0 = arith.cmpi eq, %arg2, %c0_i32 : i32
    %1 = arith.extui %0 : i1 to i32
    %c0_i32_0 = arith.constant 0 : i32
    %2 = arith.cmpi ne, %1, %c0_i32_0 : i32
    scf.if %2 {
      %cst_9 = arith.constant 0.000000e+00 : f32
      %12 = vector.broadcast %cst_9 : f32 to vector<16x128xf32>
      %c0_10 = arith.constant 0 : index
      %c0_11 = arith.constant 0 : index
      %13 = vector.load %arg7[%c0_10, %c0_11] : memref<16x128xf32, #tpu.memory_space<vmem>>, vector<16x128xf32>
      tpu.vector_store %arg7[%c0_10, %c0_11], %12 {strides = array<i32>} : memref<16x128xf32, #tpu.memory_space<vmem>>, vector<16x128xf32>,
    } else {
    }
    %c0 = arith.constant 0 : index
    %c0_1 = arith.constant 0 : index
    %3 = vector.load %arg7[%c0, %c0_1] : memref<16x128xf32, #tpu.memory_space<vmem>>, vector<16x128xf32>
    %c0_2 = arith.constant 0 : index
    %c0_3 = arith.constant 0 : index
    %4 = vector.load %arg3[%c0_2, %c0_3] : memref<16x128xbf16, #tpu.memory_space<vmem>>, vector<16x128xbf16>
    %c0_4 = arith.constant 0 : index
    %c0_5 = arith.constant 0 : index
    %5 = vector.load %arg4[%c0_4, %c0_5] : memref<128x128xbf16, #tpu.memory_space<vmem>>, vector<128x128xbf16>
    %cst = arith.constant dense<0.000000e+00> : vector<16x128xf32>
    %6 = tpu.matmul %4, %5, %cst {dimension_numbers = #tpu.dot_dimension_numbers<[1], [0], [0], [1], [0, 0, 1, 1], [], []>} : vector<16x128xbf16>, vector<128x128xbf16>, vector<16x128xf32> -> vector<16x128xf32>
    %7 = arith.addf %3, %6 : vector<16x128xf32>
    %c0_6 = arith.constant 0 : index
    %c0_7 = arith.constant 0 : index
    %8 = vector.load %arg7[%c0_6, %c0_7] : memref<16x128xf32, #tpu.memory_space<vmem>>, vector<16x128xf32>
    tpu.vector_store %arg7[%c0_6, %c0_7], %7 {strides = array<i32>} : memref<16x128xf32, #tpu.memory_space<vmem>>, vector<16x128xf32>,
    %c1_i32 = arith.constant 1 : i32
    %9 = arith.cmpi eq, %arg2, %c1_i32 : i32
    %10 = arith.extui %9 : i1 to i32
    %c0_i32_8 = arith.constant 0 : i32
    %11 = arith.cmpi ne, %10, %c0_i32_8 : i32
    scf.if %11 {
      %c0_9 = arith.constant 0 : index
      %c0_10 = arith.constant 0 : index
      %12 = vector.load %arg7[%c0_9, %c0_10] : memref<16x128xf32, #tpu.memory_space<vmem>>, vector<16x128xf32>
      %c0_11 = arith.constant 0 : index
      %c0_12 = arith.constant 0 : index
      %13 = vector.load %arg5[%c0_11, %c0_12] : memref<1x128xf32, #tpu.memory_space<vmem>>, vector<1x128xf32>
      %14 = vector.broadcast %13 : vector<1x128xf32> to vector<16x128xf32>
      %15 = arith.addf %12, %14 : vector<16x128xf32>
      %c0_13 = arith.constant 0 : index
      %c0_14 = arith.constant 0 : index
      %16 = vector.load %arg6[%c0_13, %c0_14] : memref<16x128xf32, #tpu.memory_space<vmem>>, vector<16x128xf32>
      tpu.vector_store %arg6[%c0_13, %c0_14], %15 {strides = array<i32>} : memref<16x128xf32, #tpu.memory_space<vmem>>, vector<16x128xf32>,
    } else {
    }
    return
  }
  func.func @transform_0(%arg0: i32, %arg1: i32, %arg2: i32) -> (i32, i32) {
    %c0_i32 = arith.constant 0 : i32
    return %arg0, %arg2 : i32, i32
  }
  func.func @transform_1(%arg0: i32, %arg1: i32, %arg2: i32) -> (i32, i32) {
    %c0_i32 = arith.constant 0 : i32
    return %arg2, %arg1 : i32, i32
  }
  func.func @transform_2(%arg0: i32, %arg1: i32, %arg2: i32) -> (i32, i32) {
    %c0_i32 = arith.constant 0 : i32
    %c0_i32_0 = arith.constant 0 : i32
    return %c0_i32, %arg1 : i32, i32
  }
  func.func @transform_3(%arg0: i32, %arg1: i32, %arg2: i32) -> (i32, i32) {
    %c0_i32 = arith.constant 0 : i32
    return %arg0, %arg1 : i32, i32
  }
}

</mosaic_0001>

<llo_original>
// kernel: tpu_custom_call.1
$region0: #{tpu_custom_call.1}
  #allocation0 [shape = 'u32[]', space=smem, size = 0x4, offset = 0x4, fixed_abs, tag = 'smem constant byte address 0x4 - core index']
  #allocation1 [shape = 'u32[144,128]{1,0:T(1,128)}', space=vmem, size = 0x12000, scoped, tag = 'internal scratch']
  #allocation2 [shape = 'f32[16,128]{1,0:T(8,128)}', space=vmem, size = 0x2000, scoped, tag = 'scratch operand']
  %s0 = inlined_call_operand.hbm [shape: bf16[32,256], index: 0, kind: input, shape index: {}]
  %s1 = inlined_call_operand.hbm [shape: bf16[256,256], index: 1, kind: input, shape index: {}]
  %s2 = inlined_call_operand.vmem [shape: f32[1,256], index: 2, kind: input, shape index: {}]
  %s3 = inlined_call_operand.hbm [shape: f32[32,256], index: 3, kind: output, shape index: {}]
  %s4 = sld [smem:[#allocation0]]
  $region61: #{tpu_custom_call.1} parent=0
    _
  %s6 = ssub.s32 1, %s4
  %s7 = scalar_select 0, %s6, %s4
  $region1: #{tpu_custom_call.1} parent=0
    #allocation3 [shape = 'u8[8192]{0}', space=vmem, size = 0x2000, scoped, tag = 'input window, operand 0']
    #allocation4 [shape = 's32[2]{0}', space=sflag, size = 0x8, scoped, tag = 'scoped memory for tpu_custom_call.1']
    #allocation5 [shape = 's32[2]{0}', space=sflag, size = 0x8, scoped, tag = 'scoped memory for tpu_custom_call.1']
    #allocation6 [shape = 'u8[65536]{0}', space=vmem, size = 0x10000, scoped, tag = 'input window, operand 1']
    #allocation7 [shape = 's32[2]{0}', space=sflag, size = 0x8, scoped, tag = 'scoped memory for tpu_custom_call.1']
    #allocation8 [shape = 'u8[16384]{0}', space=vmem, size = 0x4000, scoped, tag = 'output window, operand 0']
    %8 = vsyncpa [#allocation4], 0
    %s9 = scalar_lea.sflag [#allocation4], 1
    %10 = vsyncpa %s9, 0
    %11 = vsyncpa [#allocation7], 0
    %s12 = scalar_lea.sflag [#allocation7], 1
    %13 = vsyncpa %s12, 0
    %14 = vsyncpa [#allocation5], 0
    %s15 = scalar_lea.sflag [#allocation5], 1
    %16 = vsyncpa %s15, 0
    loop: start=0, step=1, limit=10
    $region2: #{tpu_custom_call.1} parent=1 // loop_pre_header
      _
    $region3: #{tpu_custom_call.1} parent=1 // loop_header
      %s18 = sphi 0, %s22
      %p19 = scmp.ge.s32.totalorder %s18, 10
      %s25 = sphi 0, %s44
      %s26 = sphi 0, %s40
      %s27 = sphi 0, %s36
      %s28 = sphi 0, %s25
      %s29 = sphi 0, %s26
      %s30 = sphi 0, %s27
      %s31 = sphi 0, %s28
      %s32 = sphi 0, %s29
      %s33 = sphi 0, %s30
      %s49 = sphi 0, %s51
      %s52 = sphi 0, %s49
      %s53 = sphi 0, %s52
      %s69 = sphi 0, %s53
      %s77 = sphi 0, %s79
      %s80 = sphi 0, %s77
      %s81 = sphi 0, %s80
      %s97 = sphi 0, %s81
      %s103 = sphi 0, %s105
      %s106 = sphi 0, %s103
      %s107 = sphi 0, %s106
      %s123 = sphi 0, %s107
      %s131 = sphi 0, %s133
      %s134 = sphi 0, %s131
      %s135 = sphi 0, %s134
      %s151 = sphi 0, %s135
    $region4: #{tpu_custom_call.1} parent=1 // loop_header_branch
      %21 = sbr.rel (%p19) target = $region8
    $region5: #{tpu_custom_call.1} parent=1 // loop_body
      %s23 = ssub.s32 %s18, 1
      %s24 = ssub.s32 %s18, 2
      %s34 = sadd.s32 1, %s27
      %p35 = scmp.ge.s32.totalorder %s34, 2
      %s36 = scalar_select %p35, 0, %s34
      %s37 = sadd.s32 1, %s26
      %s38 = scalar_select %p35, %s37, %s26
      %p39 = scmp.ge.s32.totalorder %s38, 2
      %s40 = scalar_select %p39, 0, %s38
      %s41 = sadd.s32 1, %s25
      %s42 = scalar_select %p39, %s41, %s25
      %p43 = scmp.ge.s32.totalorder %s42, 2
      %s44 = scalar_select %p43, 0, %s42
      %s45 = ssub.s32 %s25, %s44
      %s46 = ssub.s32 %s27, %s36
      %s47 = sor.u32 %s45, %s46
      %p48 = scmp.eq.s32.totalorder %s47, 0
      %s50 = sadd.s32 %s49, 1
      %s51 = scalar_select %p48, %s49, %s50
      %p54 = pneg %p48
      %p55 = scmp.eq.s32.totalorder %s18, 7
      %p56 = por %p54, %p55
      %p57 = scmp.ne.s32.totalorder %s49, %s52
      %p58 = scmp.eq.s32.totalorder %s18, 0
      %p59 = por %p57, %p58
      %p60 = scmp.ne.s32.totalorder %s49, %s52
      %p61 = scmp.eq.s32.totalorder %s23, 7
      %p62 = por %p60, %p61
      %p63 = scmp.ne.s32.totalorder %s52, %s53
      %p64 = scmp.eq.s32.totalorder %s23, 0
      %p65 = por %p63, %p64
      %p66 = scmp.ne.s32.totalorder %s52, %s53
      %p67 = scmp.eq.s32.totalorder %s24, 7
      %p68 = por %p66, %p67
      %p70 = scmp.ne.s32.totalorder %s53, %s69
      %p71 = scmp.eq.s32.totalorder %s24, 0
      %p72 = por %p70, %p71
      %s73 = ssub.s32 %s27, %s36
      %s74 = ssub.s32 %s26, %s40
      %s75 = sor.u32 %s73, %s74
      %p76 = scmp.eq.s32.totalorder %s75, 0
      %s78 = sadd.s32 %s77, 1
      %s79 = scalar_select %p76, %s77, %s78
      %p82 = pneg %p76
      %p83 = scmp.eq.s32.totalorder %s18, 7
      %p84 = por %p82, %p83
      %p85 = scmp.ne.s32.totalorder %s77, %s80
      %p86 = scmp.eq.s32.totalorder %s18, 0
      %p87 = por %p85, %p86
      %p88 = scmp.ne.s32.totalorder %s77, %s80
      %p89 = scmp.eq.s32.totalorder %s23, 7
      %p90 = por %p88, %p89
      %p91 = scmp.ne.s32.totalorder %s80, %s81
      %p92 = scmp.eq.s32.totalorder %s23, 0
      %p93 = por %p91, %p92
      %p94 = scmp.ne.s32.totalorder %s80, %s81
      %p95 = scmp.eq.s32.totalorder %s24, 7
      %p96 = por %p94, %p95
      %p98 = scmp.ne.s32.totalorder %s81, %s97
      %p99 = scmp.eq.s32.totalorder %s24, 0
      %p100 = por %p98, %p99
      %s101 = ssub.s32 %s26, %s40
      %p102 = scmp.eq.s32.totalorder %s101, 0
      %s104 = sadd.s32 %s103, 1
      %s105 = scalar_select %p102, %s103, %s104
      %p108 = pneg %p102
      %p109 = scmp.eq.s32.totalorder %s18, 7
      %p110 = por %p108, %p109
      %p111 = scmp.ne.s32.totalorder %s103, %s106
      %p112 = scmp.eq.s32.totalorder %s18, 0
      %p113 = por %p111, %p112
      %p114 = scmp.ne.s32.totalorder %s103, %s106
      %p115 = scmp.eq.s32.totalorder %s23, 7
      %p116 = por %p114, %p115
      %p117 = scmp.ne.s32.totalorder %s106, %s107
      %p118 = scmp.eq.s32.totalorder %s23, 0
      %p119 = por %p117, %p118
      %p120 = scmp.ne.s32.totalorder %s106, %s107
      %p121 = scmp.eq.s32.totalorder %s24, 7
      %p122 = por %p120, %p121
      %p124 = scmp.ne.s32.totalorder %s107, %s123
      %p125 = scmp.eq.s32.totalorder %s24, 0
      %p126 = por %p124, %p125
      %s127 = ssub.s32 %s25, %s44
      %s128 = ssub.s32 %s26, %s40
      %s129 = sor.u32 %s127, %s128
      %p130 = scmp.eq.s32.totalorder %s129, 0
      %s132 = sadd.s32 %s131, 1
      %s133 = scalar_select %p130, %s131, %s132
      %p136 = pneg %p130
      %p137 = scmp.eq.s32.totalorder %s18, 7
      %p138 = por %p136, %p137
      %p139 = scmp.ne.s32.totalorder %s131, %s134
      %p140 = scmp.eq.s32.totalorder %s18, 0
      %p141 = por %p139, %p140
      %p142 = scmp.ne.s32.totalorder %s131, %s134
      %p143 = scmp.eq.s32.totalorder %s23, 7
      %p144 = por %p142, %p143
      %p145 = scmp.ne.s32.totalorder %s134, %s135
      %p146 = scmp.eq.s32.totalorder %s23, 0
      %p147 = por %p145, %p146
      %p148 = scmp.ne.s32.totalorder %s134, %s135
      %p149 = scmp.eq.s32.totalorder %s24, 7
      %p150 = por %p148, %p149
      %p152 = scmp.ne.s32.totalorder %s135, %s151
      %p153 = scmp.eq.s32.totalorder %s24, 0
      %p154 = por %p152, %p153
      %p155 = scmp.le.s32.totalorder 1, %s18
      %p156 = scmp.lt.s32.totalorder %s18, 9
      %p157 = pnand %p155, %p156
      %p158 = pneg %p157
      // Predicated region
      $region9: #{tpu_custom_call.1} parent=5 // pred_check
        _
      $region10: #{tpu_custom_call.1} parent=5 // pred_check_branch
        %160 = sbr.rel (%p157) target = $region12
      $region11: #{tpu_custom_call.1} parent=5 // pred_region
        %s161 = ssub.s32 %s18, 1
      $region12: #{tpu_custom_call.1} parent=5 // pred_fallthru
        _
      %p162 = scmp.lt.s32.totalorder %s18, 8
      // Predicated region
      $region13: #{tpu_custom_call.1} parent=5 // pred_check
        %p163 = pneg %p162
      $region14: #{tpu_custom_call.1} parent=5 // pred_check_branch
        %165 = sbr.rel (%p163) target = $region16
      $region15: #{tpu_custom_call.1} parent=5 // pred_region
        // Predicated region
        $region17: #{tpu_custom_call.1} parent=15 // pred_check
          %p166 = pneg %p59
        $region18: #{tpu_custom_call.1} parent=15 // pred_check_branch
          %168 = sbr.rel (%p166) target = $region20
        $region19: #{tpu_custom_call.1} parent=15 // pred_region
          %s169 = sand.u32 %s49, 1
          %s170 = scalar_lea.sflag [#allocation4], %s169
          %s171 = sand.u32 %s49, 1
          %s172 = smul.addr %s171, 8
          %s173 = scalar_lea.vmem [#allocation3], %s172
          %s174 = smul.u32 2, %s25
          %s176 = ssub.s32 128, 128
          %177 = vsyncadd %s170, %s176
          %s178 = smul.addr %s174, 2
          %s179 = sadd.s32 %s27, %s178
          %s180 = smul.addr %s179, 64
          %s181 = scalar_lea.hbm %s0, %s180
          %s182 = sshll.u32 %s173, 4
          %s183 = int_to_ptr.vmem [resolvable:$true] %s182
          %188 = dma.hbm_to_vmem [thread:$0]  %s181, 128, %s183, %s170, 128, 64, 4
        $region20: #{tpu_custom_call.1} parent=15 // pred_fallthru
          _
        // Predicated region
        $region21: #{tpu_custom_call.1} parent=15 // pred_check
          %p189 = pneg %p87
        $region22: #{tpu_custom_call.1} parent=15 // pred_check_branch
          %191 = sbr.rel (%p189) target = $region24
        $region23: #{tpu_custom_call.1} parent=15 // pred_region
          %s192 = sand.u32 %s77, 1
          %s193 = scalar_lea.sflag [#allocation7], %s192
          %s194 = sand.u32 %s77, 1
          %s195 = smul.addr %s194, 64
          %s196 = scalar_lea.vmem [#allocation6], %s195
          %s197 = smul.u32 16, %s27
          %s199 = ssub.s32 1024, 1024
          %200 = vsyncadd %s193, %s199
          %s201 = smul.addr %s197, 2
          %s202 = sadd.s32 %s26, %s201
          %s203 = smul.addr %s202, 64
          %s204 = scalar_lea.hbm %s1, %s203
          %s205 = sshll.u32 %s196, 4
          %s206 = int_to_ptr.vmem [resolvable:$true] %s205
          %211 = dma.hbm_to_vmem [thread:$0]  %s204, 1024, %s206, %s193, 128, 64, 4
        $region24: #{tpu_custom_call.1} parent=15 // pred_fallthru
          _
        // Predicated region
        $region25: #{tpu_custom_call.1} parent=15 // pred_check
          %p212 = pneg %p113
        $region26: #{tpu_custom_call.1} parent=15 // pred_check_branch
          %214 = sbr.rel (%p212) target = $region28
        $region27: #{tpu_custom_call.1} parent=15 // pred_region
          %p215 = scmp.lt.s32.totalorder %s26, 1
          %s216 = scalar_select %p215, %s26, 1
          %s217 = scalar_lea.vmem %s2, %s216
        $region28: #{tpu_custom_call.1} parent=15 // pred_fallthru
          _
      $region16: #{tpu_custom_call.1} parent=5 // pred_fallthru
        _
      %p218 = scmp.le.s32.totalorder 1, %s18
      %p219 = scmp.lt.s32.totalorder %s18, 9
      %p220 = pnand %p218, %p219
      %p221 = pneg %p220
      // Predicated region
      $region29: #{tpu_custom_call.1} parent=5 // pred_check
        _
      $region30: #{tpu_custom_call.1} parent=5 // pred_check_branch
        %223 = sbr.rel (%p220) target = $region32
      $region31: #{tpu_custom_call.1} parent=5 // pred_region
        %s224 = ssub.s32 %s18, 1
        %s225 = sand.u32 %s52, 1
        %s226 = scalar_lea.sflag [#allocation4], %s225
        %s227 = sand.u32 %s52, 1
        %s228 = smul.addr %s227, 8
        %s229 = scalar_lea.vmem [#allocation3], %s228
        // Predicated region
        $region33: #{tpu_custom_call.1} parent=31 // pred_check
          %p230 = pneg %p65
        $region34: #{tpu_custom_call.1} parent=31 // pred_check_branch
          %232 = sbr.rel (%p230) target = $region36
        $region35: #{tpu_custom_call.1} parent=31 // pred_region
          %233 = dma.done %s226, 128
        $region36: #{tpu_custom_call.1} parent=31 // pred_fallthru
          _
        %s234 = sand.u32 %s80, 1
        %s235 = scalar_lea.sflag [#allocation7], %s234
        %s236 = sand.u32 %s80, 1
        %s237 = smul.addr %s236, 64
        %s238 = scalar_lea.vmem [#allocation6], %s237
        // Predicated region
        $region37: #{tpu_custom_call.1} parent=31 // pred_check
          %p239 = pneg %p93
        $region38: #{tpu_custom_call.1} parent=31 // pred_check_branch
          %241 = sbr.rel (%p239) target = $region40
        $region39: #{tpu_custom_call.1} parent=31 // pred_region
          %242 = dma.done %s235, 1024
        $region40: #{tpu_custom_call.1} parent=31 // pred_fallthru
          _
        %s243 = sand.u32 %s52, 1
        %s244 = scalar_lea.sflag [#allocation4], %s243
        %s245 = sand.u32 %s52, 1
        %s246 = smul.addr %s245, 8
        %s247 = scalar_lea.vmem [#allocation3], %s246
        %p248 = pneg %p65
        %p249 = pneg %p62
        %s250 = sand.u32 %s80, 1
        %s251 = scalar_lea.sflag [#allocation7], %s250
        %s252 = sand.u32 %s80, 1
        %s253 = smul.addr %s252, 64
        %s254 = scalar_lea.vmem [#allocation6], %s253
        %p255 = pneg %p93
        %p256 = pneg %p90
        %p257 = scmp.lt.s32.totalorder %s29, 1
        %s258 = scalar_select %p257, %s29, 1
        %s259 = scalar_lea.vmem %s2, %s258
        %p260 = pneg %p119
        %p261 = pneg %p116
        %p262 = pneg %p147
        %p263 = pneg %p144
        %s264 = sand.u32 %s134, 1
        %s265 = scalar_lea.sflag [#allocation5], %s264
        %s266 = sand.u32 %s134, 1
        %s267 = smul.addr %s266, 16
        %s268 = scalar_lea.vmem [#allocation8], %s267
        %s269 = smul.u32 2, %s28
        %s270 = smul.u32 16, %s30
        %p271 = scmp.lt.s32.totalorder %s29, 1
        %s272 = scalar_select %p271, %s29, 1
        %s273 = scalar_lea.vmem %s2, %s272
        %s274 = smul.u32 2, %s28
        %p276 = scmp.eq.s32.totalorder %s30, 0
        // Predicated region
        $region41: #{tpu_custom_call.1} parent=31 // pred_check
          %p277 = pneg %p276
        $region42: #{tpu_custom_call.1} parent=31 // pred_check_branch
          %279 = sbr.rel (%p277) target = $region44
        $region43: #{tpu_custom_call.1} parent=31 // pred_region
          %280 = vst [vmem:[#allocation2] sm:$0xff] 0.0
          %281 = vst [vmem:[#allocation2 + $0x8] sm:$0xff] 0.0
        $region44: #{tpu_custom_call.1} parent=31 // pred_fallthru
          _
        %v282 = vld [vmem:[#allocation2] sm:$0xff]
        %v283 = vld [vmem:[#allocation2 + $0x8] sm:$0xff]
        %v284 = vld [vmem:[%s229] sm:$0xf]
        %v285 = vld [vmem:[%s229 + $0x4] sm:$0xf]
        %v286 = vld [vmem:[%s238] sm:$0xf]
        %v287 = vld [vmem:[%s238 + $0x4] sm:$0xf]
        %v288 = vld [vmem:[%s238 + $0x8] sm:$0xf]
        %v289 = vld [vmem:[%s238 + $0xc] sm:$0xf]
        %v290 = vld [vmem:[%s238 + $0x10] sm:$0xf]
        %v291 = vld [vmem:[%s238 + $0x14] sm:$0xf]
        %v292 = vld [vmem:[%s238 + $0x18] sm:$0xf]
        %v293 = vld [vmem:[%s238 + $0x1c] sm:$0xf]
        %v294 = vld [vmem:[%s238 + $0x20] sm:$0xf]
        %v295 = vld [vmem:[%s238 + $0x24] sm:$0xf]
        %v296 = vld [vmem:[%s238 + $0x28] sm:$0xf]
        %v297 = vld [vmem:[%s238 + $0x2c] sm:$0xf]
        %v298 = vld [vmem:[%s238 + $0x30] sm:$0xf]
        %v299 = vld [vmem:[%s238 + $0x34] sm:$0xf]
        %v300 = vld [vmem:[%s238 + $0x38] sm:$0xf]
        %v301 = vld [vmem:[%s238 + $0x3c] sm:$0xf]
        %v304 = vunpack.c.l.b16 %v284
        %v305 = vunpack.c.l.b16 %v285
        %v306 = vpack.c.b16 %v305, %v304
        %v324 = vunpack.c.l.b16 %v286
        %v325 = vunpack.c.l.b16 %v287
        %v326 = vunpack.c.l.b16 %v288
        %v327 = vunpack.c.l.b16 %v289
        %v328 = vunpack.c.l.b16 %v290
        %v329 = vunpack.c.l.b16 %v291
        %v330 = vunpack.c.l.b16 %v292
        %v331 = vunpack.c.l.b16 %v293
        %v332 = vunpack.c.l.b16 %v294
        %v333 = vunpack.c.l.b16 %v295
        %v334 = vunpack.c.l.b16 %v296
        %v335 = vunpack.c.l.b16 %v297
        %v336 = vunpack.c.l.b16 %v298
        %v337 = vunpack.c.l.b16 %v299
        %v338 = vunpack.c.l.b16 %v300
        %v339 = vunpack.c.l.b16 %v301
        %v340 = vpack.c.b16 %v325, %v324
        %v341 = vpack.c.b16 %v327, %v326
        %v342 = vpack.c.b16 %v329, %v328
        %v343 = vpack.c.b16 %v331, %v330
        %v344 = vpack.c.b16 %v333, %v332
        %v345 = vpack.c.b16 %v335, %v334
        %v346 = vpack.c.b16 %v337, %v336
        %v347 = vpack.c.b16 %v339, %v338
        %356 = vmatprep.subr.bf16.mxu0 0
        %357 = vmatpush1.bf16.msra.mxu0 %v347
        %358 = vmatprep.subr.bf16.mxu0 0
        %359 = vmatpush1.bf16.msra.mxu0 %v346
        %360 = vmatprep.subr.bf16.mxu0 0
        %361 = vmatpush1.bf16.msra.mxu0 %v345
        %362 = vmatprep.subr.bf16.mxu0 0
        %363 = vmatpush1.bf16.msra.mxu0 %v344
        %364 = vmatprep.subr.bf16.mxu0 0
        %365 = vmatpush1.bf16.msra.mxu0 %v343
        %366 = vmatprep.subr.bf16.mxu0 0
        %367 = vmatpush1.bf16.msra.mxu0 %v342
        %368 = vmatprep.subr.bf16.mxu0 0
        %369 = vmatpush1.bf16.msra.mxu0 %v341
        %370 = vmatprep.subr.bf16.mxu0 0
        %371 = vmatpush1.bf16.msra.mxu0 %v340
        %372 = vmatprep.subr.bf16.mxu0 0
        %373 = vmatpush2.bf16.msra.mxu0 0
        %374 = vmatprep.subr.bf16.mxu0 0
        %375 = vmatpush2.bf16.msra.mxu0 0
        %376 = vmatprep.subr.bf16.mxu0 0
        %377 = vmatpush2.bf16.msra.mxu0 0
        %378 = vmatprep.subr.bf16.mxu0 0
        %379 = vmatpush2.bf16.msra.mxu0 0
        %380 = vmatprep.subr.bf16.mxu0 0
        %381 = vmatpush2.bf16.msra.mxu0 0
        %382 = vmatprep.subr.bf16.mxu0 0
        %383 = vmatpush2.bf16.msra.mxu0 0
        %384 = vmatprep.subr.bf16.mxu0 0
        %385 = vmatpush2.bf16.msra.mxu0 0
        %386 = vmatprep.subr.bf16.mxu0 0
        %387 = vmatpush2.bf16.msra.mxu0 0
        %388 = vmatprep.mubr.bf16.mxu0 0
        %389 = vmatmul.mubr.bf16.gmra.mxu0 %v306
        %v390 = vpop.f32.mrf.mxu0
        %v391 = vadd.f32 0.0, %v390
        %v392 = vpop.f32.mrf.mxu0
        %v393 = vpop.f32.mrf.mxu0
        %v394 = vadd.f32 0.0, %v393
        %v395 = vpop.f32.mrf.mxu0
        %396 = vdwg.mxu0
        %v397 = vadd.f32 %v282, %v391
        %v398 = vadd.f32 %v283, %v394
        %399 = vst [vmem:[#allocation2] sm:$0xff] %v397
        %400 = vst [vmem:[#allocation2 + $0x8] sm:$0xff] %v398
        %p401 = scmp.eq.s32.totalorder %s30, 1
        // Predicated region
        $region45: #{tpu_custom_call.1} parent=31 // pred_check
          %p402 = pneg %p401
        $region46: #{tpu_custom_call.1} parent=31 // pred_check_branch
          %404 = sbr.rel (%p402) target = $region48
        $region47: #{tpu_custom_call.1} parent=31 // pred_region
          %v405 = vld [vmem:[#allocation2] sm:$0xff]
          %v406 = vld [vmem:[#allocation2 + $0x8] sm:$0xff]
          %v407 = vld [vmem:[%s273] sm:$0x1]
          %v409 = vlaneseq
          %v410 = vshrl.u32 %v409, 7
          %v411 = vsub.s32 0, %v410
          %v412 = vrot.slane %v407, %v411
          %v414 = vadd.f32 %v405, %v412
          %v415 = vadd.f32 %v406, %v412
          %416 = vst [vmem:[%s268] sm:$0xff] %v414
          %417 = vst [vmem:[%s268 + $0x8] sm:$0xff] %v415
        $region48: #{tpu_custom_call.1} parent=31 // pred_fallthru
          _
        %s418 = sand.u32 %s134, 1
        %s419 = scalar_lea.sflag [#allocation5], %s418
        %s420 = sand.u32 %s134, 1
        %s421 = smul.addr %s420, 16
        %s422 = scalar_lea.vmem [#allocation8], %s421
        // Predicated region
        $region49: #{tpu_custom_call.1} parent=31 // pred_check
          %p423 = pneg %p144
        $region50: #{tpu_custom_call.1} parent=31 // pred_check_branch
          %425 = sbr.rel (%p423) target = $region52
        $region51: #{tpu_custom_call.1} parent=31 // pred_region
          %s426 = smul.u32 2, %s28
          %s428 = ssub.s32 256, 256
          %429 = vsyncadd %s419, %s428
          %s430 = smul.addr %s426, 2
          %s431 = sadd.s32 %s29, %s430
          %s432 = smul.addr %s431, 128
          %s433 = scalar_lea.hbm %s3, %s432
          %s434 = sshll.u32 %s422, 4
          %s435 = int_to_ptr.vmem [resolvable:$true] %s434
          %440 = dma.vmem_to_hbm [thread:$0]  %s435, 256, %s433, %s419, 128, 256, 8
        $region52: #{tpu_custom_call.1} parent=31 // pred_fallthru
          _
      $region32: #{tpu_custom_call.1} parent=5 // pred_fallthru
        _
      %p441 = scmp.le.s32.totalorder 2, %s18
      // Predicated region
      $region53: #{tpu_custom_call.1} parent=5 // pred_check
        %p442 = pneg %p441
      $region54: #{tpu_custom_call.1} parent=5 // pred_check_branch
        %444 = sbr.rel (%p442) target = $region56
      $region55: #{tpu_custom_call.1} parent=5 // pred_region
        %s445 = ssub.s32 %s18, 2
        // Predicated region
        $region57: #{tpu_custom_call.1} parent=55 // pred_check
          %p446 = pneg %p150
        $region58: #{tpu_custom_call.1} parent=55 // pred_check_branch
          %448 = sbr.rel (%p446) target = $region60
        $region59: #{tpu_custom_call.1} parent=55 // pred_region
          %s449 = sand.u32 %s135, 1
          %s450 = scalar_lea.sflag [#allocation5], %s449
          %s451 = sand.u32 %s135, 1
          %s452 = smul.addr %s451, 16
          %s453 = scalar_lea.vmem [#allocation8], %s452
          %454 = dma.done %s450, 256
        $region60: #{tpu_custom_call.1} parent=55 // pred_fallthru
          _
      $region56: #{tpu_custom_call.1} parent=5 // pred_fallthru
        _
    $region6: #{tpu_custom_call.1} parent=1 // loop_footer
      %s22 = sadd.s32 1, %s18
    $region7: #{tpu_custom_call.1} parent=1 // loop_footer_branch
      %17 = sbr.rel target = $region3
    $region8: #{tpu_custom_call.1} parent=1 // loop_exit
      _
    %455 = vsyncpa [#allocation4], 1
    %s456 = scalar_lea.sflag [#allocation4], 1
    %457 = vsyncpa %s456, 1
    %458 = vsyncpa [#allocation7], 1
    %s459 = scalar_lea.sflag [#allocation7], 1
    %460 = vsyncpa %s459, 1
    %461 = vsyncpa [#allocation5], 1
    %s462 = scalar_lea.sflag [#allocation5], 1
    %463 = vsyncpa %s462, 1

</llo_original>
